<compile_context>
chip_gen: v5e
topology: v5e:2x2
jax: 0.10.0
libtpu: 0.0.40
codegen_flags: <defaults>
</compile_context>

<pallas_src>
import functools

import jax
import jax.numpy as jnp
from jax.experimental import pallas as pl
from jax.experimental.pallas import tpu as pltpu


# ---------------------------------------------------------------------------
# Parameter setup (glue, plain JAX)
# ---------------------------------------------------------------------------
def gaussian_1d(window_size: int, sigma: float) -> jnp.ndarray:
    x = jnp.arange(window_size, dtype=jnp.float32)
    g = jnp.exp(-((x - window_size // 2) ** 2) / (2.0 * sigma ** 2))
    return g / jnp.sum(g)


def conv_band_matrix(n: int, g: jnp.ndarray, window_size: int) -> jnp.ndarray:
    """Banded matrix G (n x n) with G[i, j] = g[j - i + pad]; zero outside band.

    Left-multiplying an (n, m) image by G performs a 1-D 'same' cross-correlation
    with zero padding along the first axis (F.conv2d's padding behaviour).
    """
    pad = window_size // 2
    i = jnp.arange(n)
    d = i[None, :] - i[:, None] + pad
    valid = (d >= 0) & (d < window_size)
    return jnp.where(valid, g[jnp.clip(d, 0, window_size - 1)], 0.0).astype(jnp.float32)


def _pick_images_per_step(n: int, h: int, w: int,
                          max_nb: int = 16,
                          budget_bytes: int = 24 * 1024 * 1024) -> int:
    """Largest divisor of n that keeps the per-step working set inside budget."""
    per_image_bytes = 4 * h * w * 28          # rough f32 working-set estimate
    cap = max(1, min(max_nb, budget_bytes // max(per_image_bytes, 1)))
    nb = 1
    for d in range(1, min(cap, n) + 1):
        if n % d == 0:
            nb = d
    return nb


# ---------------------------------------------------------------------------
# Pallas kernel (nb images per grid step)
# ---------------------------------------------------------------------------
def _flatten_images(p: jnp.ndarray) -> jnp.ndarray:
    """(nb, h, w) -> (nb*h, w), preferring the cheap leading-dim collapse."""
    nb, h, w = p.shape
    if h % 8 == 0:
        return p.reshape(nb * h, w)
    return jnp.concatenate([p[i] for i in range(nb)], axis=0)


def _ssim_thresh_kernel(x1_ref, x2_ref, gh_ref, gwt_ref,
                        ssim_sum_ref, mask_sum_ref, *, threshold, nb):
    gh = gh_ref[...]           # (H, H) band matrix (height pass, left multiply)
    gwt = gwt_ref[...]         # (W, W) band matrix^T (width pass, right multiply)
    h = gh.shape[0]
    w = gwt.shape[0]

    x1 = x1_ref[...]           # (nb, H, W) f32
    x2 = x2_ref[...]           # (nb, H, W) f32

    # Five depthwise-conv inputs for all nb images, computed exactly once and
    # stacked along sublanes, quantity-major / image-minor:  (5*nb*H, W).
    quantities = [x1, x2, x1 * x1, x2 * x2, x1 * x2]
    stacked = jnp.concatenate([_flatten_images(q) for q in quantities], axis=0)

    # Width pass: one wide 2-D MXU matmul (contraction = W).
    tw = jnp.dot(stacked, gwt, preferred_element_type=jnp.float32)      # (5*nb*H, W)

    # Re-stack the 5*nb chunks along lanes so the height pass is also a single
    # 2-D matmul (contraction = H, lane-dense 5*nb*W output).
    th_in = jnp.concatenate(
        [tw[k * h:(k + 1) * h] for k in range(5 * nb)], axis=1)         # (H, 5*nb*W)
    conv = jnp.dot(gh, th_in, preferred_element_type=jnp.float32)       # (H, 5*nb*W)

    nw = nb * w
    mu1 = conv[:, 0 * nw:1 * nw]
    mu2 = conv[:, 1 * nw:2 * nw]
    e11 = conv[:, 2 * nw:3 * nw]
    e22 = conv[:, 3 * nw:4 * nw]
    e12 = conv[:, 4 * nw:5 * nw]

    mu1_sq = mu1 * mu1
    mu2_sq = mu2 * mu2
    mu1_mu2 = mu1 * mu2
    sigma1_sq = e11 - mu1_sq
    sigma2_sq = e22 - mu2_sq
    sigma12 = e12 - mu1_mu2

    c1 = 0.01 ** 2
    c2 = 0.03 ** 2
    ssim_map = ((2.0 * mu1_mu2 + c1) * (2.0 * sigma12 + c2)) / (
        (mu1_sq + mu2_sq + c1) * (sigma1_sq + sigma2_sq + c2))

    # Strict '<' exactly as in the PyTorch module.
    mask = (jnp.abs(x1 - x2) < threshold).astype(jnp.float32)

    # Per-step partial sums, broadcast across one lane-dense (1, 8, 128) block.
    ssim_sum_ref[...] = jnp.full(ssim_sum_ref.shape, jnp.sum(ssim_map), jnp.float32)
    mask_sum_ref[...] = jnp.full(mask_sum_ref.shape, jnp.sum(mask), jnp.float32)


# ---------------------------------------------------------------------------
# Wrapper
# ---------------------------------------------------------------------------
def ssim_loss_with_threshold(img1, img2, threshold=0.05, window_size=11,
                             reduction='mean'):
    b, c, h, w = img1.shape
    n = b * c
    x1 = img1.reshape(n, h, w).astype(jnp.float32)
    x2 = img2.reshape(n, h, w).astype(jnp.float32)

    g = gaussian_1d(window_size, 1.5)
    gh = conv_band_matrix(h, g, window_size)           # (H, H)
    gwt = conv_band_matrix(w, g, window_size).T        # (W, W)  (symmetric anyway)

    nb = _pick_images_per_step(n, h, w)
    gsteps = n // nb

    kernel = functools.partial(_ssim_thresh_kernel,
                               threshold=float(threshold), nb=nb)

    # Advisory cost estimate: two matmuls + elementwise per image.
    flops = int(n * (10 * h * w * w + 10 * h * h * w + 30 * h * w))
    bytes_accessed = int(2 * n * h * w * 4 + 2 * gsteps * 8 * 128 * 4
                         + (h * h + w * w) * 4)

    ssim_sums, mask_sums = pl.pallas_call(
        kernel,
        out_shape=(jax.ShapeDtypeStruct((gsteps, 8, 128), jnp.float32),
                   jax.ShapeDtypeStruct((gsteps, 8, 128), jnp.float32)),
        grid_spec=pltpu.PrefetchScalarGridSpec(
            num_scalar_prefetch=0,
            grid=(gsteps,),
            in_specs=[
                pl.BlockSpec((nb, h, w), lambda i: (i, 0, 0)),   # x1 tile
                pl.BlockSpec((nb, h, w), lambda i: (i, 0, 0)),   # x2 tile
                pl.BlockSpec((h, h), lambda i: (0, 0)),          # GH   (VMEM resident)
                pl.BlockSpec((w, w), lambda i: (0, 0)),          # GW^T (VMEM resident)
            ],
            out_specs=[
                pl.BlockSpec((1, 8, 128), lambda i: (i, 0, 0)),
                pl.BlockSpec((1, 8, 128), lambda i: (i, 0, 0)),
            ]),
        compiler_params=pltpu.CompilerParams(
            dimension_semantics=("parallel",),            # megacore-friendly (v7x)
            vmem_limit_bytes=48 * 1024 * 1024),           # safe on v5e/v6e/v7x
        cost_estimate=pl.CostEstimate(flops=flops, transcendentals=0,
                                      bytes_accessed=bytes_accessed),
    )(x1, x2, gh, gwt)

    count = float(n * h * w)
    ssim_index = jnp.sum(ssim_sums[:, 0, 0]) / count      # global mean of ssim_map
    ssim_loss = 1.0 - ssim_index                          # scalar (size_average=True)
    mask_sum = jnp.sum(mask_sums[:, 0, 0])

    if reduction == 'mean':
        # mean(ssim_loss * mask) == ssim_loss * mean(mask) since ssim_loss is scalar.
        return ssim_loss * (mask_sum / count)
    elif reduction == 'sum':
        return ssim_loss * mask_sum
    else:
        # TODO(synk): reduction='none' (full-size weighted map output) not implemented.
        raise NotImplementedError("reduction must be 'mean' or 'sum'")


# ---------------------------------------------------------------------------
# Pure-JAX reference (for correctness check only)
# ---------------------------------------------------------------------------
def _ref_loss(img1, img2, threshold=0.05, window_size=11):
    b, c, h, w = img1.shape
    g = gaussian_1d(window_size, 1.5)
    w2d = jnp.outer(g, g)
    window = jnp.broadcast_to(w2d[None, None], (c, 1, window_size, window_size))

    def conv(x):
        return jax.lax.conv_general_dilated(
            x, window, window_strides=(1, 1),
            padding=[(window_size // 2, window_size // 2)] * 2,
            dimension_numbers=('NCHW', 'OIHW', 'NCHW'),
            feature_group_count=c)

    mu1, mu2 = conv(img1), conv(img2)
    mu1_sq, mu2_sq, mu1_mu2 = mu1 * mu1, mu2 * mu2, mu1 * mu2
    s1 = conv(img1 * img1) - mu1_sq
    s2 = conv(img2 * img2) - mu2_sq
    s12 = conv(img1 * img2) - mu1_mu2
    c1, c2 = 0.01 ** 2, 0.03 ** 2
    ssim_map = ((2 * mu1_mu2 + c1) * (2 * s12 + c2)) / ((mu1_sq + mu2_sq + c1) * (s1 + s2 + c2))
    ssim_loss = 1.0 - jnp.mean(ssim_map)
    mask = (jnp.abs(img1 - img2) < threshold).astype(jnp.float32)
    return jnp.mean(ssim_loss * mask)


if __name__ == "__main__":
    key = jax.random.PRNGKey(0)
    k1, k2 = jax.random.split(key)
    img1 = jax.random.uniform(k1, (2, 4, 16, 16), dtype=jnp.float32)
    img2 = img1 + 0.1 * jax.random.normal(k2, (2, 4, 16, 16), dtype=jnp.float32)

    out = ssim_loss_with_threshold(img1, img2, threshold=0.05, window_size=11)
    out = jax.block_until_ready(out)

    ref = jax.block_until_ready(_ref_loss(img1, img2, threshold=0.05, window_size=11))
    assert jnp.allclose(out, ref, rtol=1e-3, atol=1e-4), (out, ref)

    print("KERNEL_OK")
</pallas_src>

<mosaic_0001>
module attributes {stable_mosaic.version = 11 : i64} {
  func.func @_ssim_thresh_kernel(%arg0: i32, %arg1: memref<8x16x16xf32, #tpu.memory_space<vmem>>, %arg2: memref<8x16x16xf32, #tpu.memory_space<vmem>>, %arg3: memref<16x16xf32, #tpu.memory_space<vmem>>, %arg4: memref<16x16xf32, #tpu.memory_space<vmem>>, %arg5: memref<1x8x128xf32, #tpu.memory_space<vmem>>, %arg6: memref<1x8x128xf32, #tpu.memory_space<vmem>>) attributes {dimension_semantics = [#tpu.dimension_semantics<parallel>], iteration_bounds = array<i64: 1>, scalar_prefetch = 0 : i64, scratch_operands = 0 : i64, tpu.core_type = #tpu.core_type<tc>, window_params = [{transform_indices = @transform_0, window_bounds = array<i64: 8, 16, 16>}, {transform_indices = @transform_1, window_bounds = array<i64: 8, 16, 16>}, {pipeline_mode = #tpu.pipeline_mode<synchronous>, transform_indices = @transform_2, window_bounds = array<i64: 16, 16>}, {pipeline_mode = #tpu.pipeline_mode<synchronous>, transform_indices = @transform_3, window_bounds = array<i64: 16, 16>}, {transform_indices = @transform_4, window_bounds = array<i64: 1, 8, 128>}, {transform_indices = @transform_5, window_bounds = array<i64: 1, 8, 128>}]} {
    %c0 = arith.constant 0 : index
    %c0_0 = arith.constant 0 : index
    %0 = vector.load %arg3[%c0, %c0_0] : memref<16x16xf32, #tpu.memory_space<vmem>>, vector<16x16xf32>
    %c0_1 = arith.constant 0 : index
    %c0_2 = arith.constant 0 : index
    %1 = vector.load %arg4[%c0_1, %c0_2] : memref<16x16xf32, #tpu.memory_space<vmem>>, vector<16x16xf32>
    %c0_3 = arith.constant 0 : index
    %c0_4 = arith.constant 0 : index
    %c0_5 = arith.constant 0 : index
    %2 = vector.load %arg1[%c0_3, %c0_4, %c0_5] : memref<8x16x16xf32, #tpu.memory_space<vmem>>, vector<8x16x16xf32>
    %c0_6 = arith.constant 0 : index
    %c0_7 = arith.constant 0 : index
    %c0_8 = arith.constant 0 : index
    %3 = vector.load %arg2[%c0_6, %c0_7, %c0_8] : memref<8x16x16xf32, #tpu.memory_space<vmem>>, vector<8x16x16xf32>
    %4 = arith.mulf %2, %2 : vector<8x16x16xf32>
    %5 = arith.mulf %3, %3 : vector<8x16x16xf32>
    %6 = arith.mulf %2, %3 : vector<8x16x16xf32>
    %7 = vector.shape_cast %2 : vector<8x16x16xf32> to vector<128x16xf32>
    %8 = vector.shape_cast %3 : vector<8x16x16xf32> to vector<128x16xf32>
    %9 = vector.shape_cast %4 : vector<8x16x16xf32> to vector<128x16xf32>
    %10 = vector.shape_cast %5 : vector<8x16x16xf32> to vector<128x16xf32>
    %11 = vector.shape_cast %6 : vector<8x16x16xf32> to vector<128x16xf32>
    %12 = tpu.concatenate %7, %8, %9, %10, %11 in 0 : vector<128x16xf32>, vector<128x16xf32>, vector<128x16xf32>, vector<128x16xf32>, vector<128x16xf32> -> vector<640x16xf32>
    %cst = arith.constant dense<0.000000e+00> : vector<640x16xf32>
    %13 = tpu.matmul %12, %1, %cst {dimension_numbers = #tpu.dot_dimension_numbers<[1], [0], [0], [1], [0, 0, 1, 1], [], []>} : vector<640x16xf32>, vector<16x16xf32>, vector<640x16xf32> -> vector<640x16xf32>
    %14 = vector.extract_strided_slice %13 {offsets = [0, 0], sizes = [16, 16], strides = [1, 1]} : vector<640x16xf32> to vector<16x16xf32>
    %15 = vector.extract_strided_slice %13 {offsets = [16, 0], sizes = [16, 16], strides = [1, 1]} : vector<640x16xf32> to vector<16x16xf32>
    %16 = vector.extract_strided_slice %13 {offsets = [32, 0], sizes = [16, 16], strides = [1, 1]} : vector<640x16xf32> to vector<16x16xf32>
    %17 = vector.extract_strided_slice %13 {offsets = [48, 0], sizes = [16, 16], strides = [1, 1]} : vector<640x16xf32> to vector<16x16xf32>
    %18 = vector.extract_strided_slice %13 {offsets = [64, 0], sizes = [16, 16], strides = [1, 1]} : vector<640x16xf32> to vector<16x16xf32>
    %19 = vector.extract_strided_slice %13 {offsets = [80, 0], sizes = [16, 16], strides = [1, 1]} : vector<640x16xf32> to vector<16x16xf32>
    %20 = vector.extract_strided_slice %13 {offsets = [96, 0], sizes = [16, 16], strides = [1, 1]} : vector<640x16xf32> to vector<16x16xf32>
    %21 = vector.extract_strided_slice %13 {offsets = [112, 0], sizes = [16, 16], strides = [1, 1]} : vector<640x16xf32> to vector<16x16xf32>
    %22 = vector.extract_strided_slice %13 {offsets = [128, 0], sizes = [16, 16], strides = [1, 1]} : vector<640x16xf32> to vector<16x16xf32>
    %23 = vector.extract_strided_slice %13 {offsets = [144, 0], sizes = [16, 16], strides = [1, 1]} : vector<640x16xf32> to vector<16x16xf32>
    %24 = vector.extract_strided_slice %13 {offsets = [160, 0], sizes = [16, 16], strides = [1, 1]} : vector<640x16xf32> to vector<16x16xf32>
    %25 = vector.extract_strided_slice %13 {offsets = [176, 0], sizes = [16, 16], strides = [1, 1]} : vector<640x16xf32> to vector<16x16xf32>
    %26 = vector.extract_strided_slice %13 {offsets = [192, 0], sizes = [16, 16], strides = [1, 1]} : vector<640x16xf32> to vector<16x16xf32>
    %27 = vector.extract_strided_slice %13 {offsets = [208, 0], sizes = [16, 16], strides = [1, 1]} : vector<640x16xf32> to vector<16x16xf32>
    %28 = vector.extract_strided_slice %13 {offsets = [224, 0], sizes = [16, 16], strides = [1, 1]} : vector<640x16xf32> to vector<16x16xf32>
    %29 = vector.extract_strided_slice %13 {offsets = [240, 0], sizes = [16, 16], strides = [1, 1]} : vector<640x16xf32> to vector<16x16xf32>
    %30 = vector.extract_strided_slice %13 {offsets = [256, 0], sizes = [16, 16], strides = [1, 1]} : vector<640x16xf32> to vector<16x16xf32>
    %31 = vector.extract_strided_slice %13 {offsets = [272, 0], sizes = [16, 16], strides = [1, 1]} : vector<640x16xf32> to vector<16x16xf32>
    %32 = vector.extract_strided_slice %13 {offsets = [288, 0], sizes = [16, 16], strides = [1, 1]} : vector<640x16xf32> to vector<16x16xf32>
    %33 = vector.extract_strided_slice %13 {offsets = [304, 0], sizes = [16, 16], strides = [1, 1]} : vector<640x16xf32> to vector<16x16xf32>
    %34 = vector.extract_strided_slice %13 {offsets = [320, 0], sizes = [16, 16], strides = [1, 1]} : vector<640x16xf32> to vector<16x16xf32>
    %35 = vector.extract_strided_slice %13 {offsets = [336, 0], sizes = [16, 16], strides = [1, 1]} : vector<640x16xf32> to vector<16x16xf32>
    %36 = vector.extract_strided_slice %13 {offsets = [352, 0], sizes = [16, 16], strides = [1, 1]} : vector<640x16xf32> to vector<16x16xf32>
    %37 = vector.extract_strided_slice %13 {offsets = [368, 0], sizes = [16, 16], strides = [1, 1]} : vector<640x16xf32> to vector<16x16xf32>
    %38 = vector.extract_strided_slice %13 {offsets = [384, 0], sizes = [16, 16], strides = [1, 1]} : vector<640x16xf32> to vector<16x16xf32>
    %39 = vector.extract_strided_slice %13 {offsets = [400, 0], sizes = [16, 16], strides = [1, 1]} : vector<640x16xf32> to vector<16x16xf32>
    %40 = vector.extract_strided_slice %13 {offsets = [416, 0], sizes = [16, 16], strides = [1, 1]} : vector<640x16xf32> to vector<16x16xf32>
    %41 = vector.extract_strided_slice %13 {offsets = [432, 0], sizes = [16, 16], strides = [1, 1]} : vector<640x16xf32> to vector<16x16xf32>
    %42 = vector.extract_strided_slice %13 {offsets = [448, 0], sizes = [16, 16], strides = [1, 1]} : vector<640x16xf32> to vector<16x16xf32>
    %43 = vector.extract_strided_slice %13 {offsets = [464, 0], sizes = [16, 16], strides = [1, 1]} : vector<640x16xf32> to vector<16x16xf32>
    %44 = vector.extract_strided_slice %13 {offsets = [480, 0], sizes = [16, 16], strides = [1, 1]} : vector<640x16xf32> to vector<16x16xf32>
    %45 = vector.extract_strided_slice %13 {offsets = [496, 0], sizes = [16, 16], strides = [1, 1]} : vector<640x16xf32> to vector<16x16xf32>
    %46 = vector.extract_strided_slice %13 {offsets = [512, 0], sizes = [16, 16], strides = [1, 1]} : vector<640x16xf32> to vector<16x16xf32>
    %47 = vector.extract_strided_slice %13 {offsets = [528, 0], sizes = [16, 16], strides = [1, 1]} : vector<640x16xf32> to vector<16x16xf32>
    %48 = vector.extract_strided_slice %13 {offsets = [544, 0], sizes = [16, 16], strides = [1, 1]} : vector<640x16xf32> to vector<16x16xf32>
    %49 = vector.extract_strided_slice %13 {offsets = [560, 0], sizes = [16, 16], strides = [1, 1]} : vector<640x16xf32> to vector<16x16xf32>
    %50 = vector.extract_strided_slice %13 {offsets = [576, 0], sizes = [16, 16], strides = [1, 1]} : vector<640x16xf32> to vector<16x16xf32>
    %51 = vector.extract_strided_slice %13 {offsets = [592, 0], sizes = [16, 16], strides = [1, 1]} : vector<640x16xf32> to vector<16x16xf32>
    %52 = vector.extract_strided_slice %13 {offsets = [608, 0], sizes = [16, 16], strides = [1, 1]} : vector<640x16xf32> to vector<16x16xf32>
    %53 = vector.extract_strided_slice %13 {offsets = [624, 0], sizes = [16, 16], strides = [1, 1]} : vector<640x16xf32> to vector<16x16xf32>
    %54 = tpu.concatenate %14, %15, %16, %17, %18, %19, %20, %21, %22, %23, %24, %25, %26, %27, %28, %29 in 1 : vector<16x16xf32>, vector<16x16xf32>, vector<16x16xf32>, vector<16x16xf32>, vector<16x16xf32>, vector<16x16xf32>, vector<16x16xf32>, vector<16x16xf32>, vector<16x16xf32>, vector<16x16xf32>, vector<16x16xf32>, vector<16x16xf32>, vector<16x16xf32>, vector<16x16xf32>, vector<16x16xf32>, vector<16x16xf32> -> vector<16x256xf32>
    %55 = tpu.concatenate %30, %31, %32, %33, %34, %35, %36, %37, %38, %39, %40, %41, %42, %43, %44, %45 in 1 : vector<16x16xf32>, vector<16x16xf32>, vector<16x16xf32>, vector<16x16xf32>, vector<16x16xf32>, vector<16x16xf32>, vector<16x16xf32>, vector<16x16xf32>, vector<16x16xf32>, vector<16x16xf32>, vector<16x16xf32>, vector<16x16xf32>, vector<16x16xf32>, vector<16x16xf32>, vector<16x16xf32>, vector<16x16xf32> -> vector<16x256xf32>
    %56 = tpu.concatenate %46, %47, %48, %49, %50, %51, %52, %53 in 1 : vector<16x16xf32>, vector<16x16xf32>, vector<16x16xf32>, vector<16x16xf32>, vector<16x16xf32>, vector<16x16xf32>, vector<16x16xf32>, vector<16x16xf32> -> vector<16x128xf32>
    %57 = tpu.concatenate %54, %55, %56 in 1 : vector<16x256xf32>, vector<16x256xf32>, vector<16x128xf32> -> vector<16x640xf32>
    %cst_9 = arith.constant dense<0.000000e+00> : vector<16x640xf32>
    %58 = tpu.matmul %0, %57, %cst_9 {dimension_numbers = #tpu.dot_dimension_numbers<[1], [0], [0], [1], [0, 0, 1, 1], [], []>} : vector<16x16xf32>, vector<16x640xf32>, vector<16x640xf32> -> vector<16x640xf32>
    %59 = vector.extract_strided_slice %58 {offsets = [0, 0], sizes = [16, 128], strides = [1, 1]} : vector<16x640xf32> to vector<16x128xf32>
    %60 = vector.extract_strided_slice %58 {offsets = [0, 128], sizes = [16, 128], strides = [1, 1]} : vector<16x640xf32> to vector<16x128xf32>
    %61 = vector.extract_strided_slice %58 {offsets = [0, 256], sizes = [16, 128], strides = [1, 1]} : vector<16x640xf32> to vector<16x128xf32>
    %62 = vector.extract_strided_slice %58 {offsets = [0, 384], sizes = [16, 128], strides = [1, 1]} : vector<16x640xf32> to vector<16x128xf32>
    %63 = vector.extract_strided_slice %58 {offsets = [0, 512], sizes = [16, 128], strides = [1, 1]} : vector<16x640xf32> to vector<16x128xf32>
    %64 = arith.mulf %59, %59 : vector<16x128xf32>
    %65 = arith.mulf %60, %60 : vector<16x128xf32>
    %66 = arith.mulf %59, %60 : vector<16x128xf32>
    %67 = arith.subf %61, %64 : vector<16x128xf32>
    %68 = arith.subf %62, %65 : vector<16x128xf32>
    %69 = arith.subf %63, %66 : vector<16x128xf32>
    %cst_10 = arith.constant 2.000000e+00 : f32
    %70 = vector.broadcast %cst_10 : f32 to vector<16x128xf32>
    %71 = arith.mulf %70, %66 : vector<16x128xf32>
    %cst_11 = arith.constant 9.99999974E-5 : f32
    %72 = vector.broadcast %cst_11 : f32 to vector<16x128xf32>
    %73 = arith.addf %71, %72 : vector<16x128xf32>
    %cst_12 = arith.constant 2.000000e+00 : f32
    %74 = vector.broadcast %cst_12 : f32 to vector<16x128xf32>
    %75 = arith.mulf %74, %69 : vector<16x128xf32>
    %cst_13 = arith.constant 8.99999984E-4 : f32
    %76 = vector.broadcast %cst_13 : f32 to vector<16x128xf32>
    %77 = arith.addf %75, %76 : vector<16x128xf32>
    %78 = arith.mulf %73, %77 : vector<16x128xf32>
    %79 = arith.addf %64, %65 : vector<16x128xf32>
    %cst_14 = arith.constant 9.99999974E-5 : f32
    %80 = vector.broadcast %cst_14 : f32 to vector<16x128xf32>
    %81 = arith.addf %79, %80 : vector<16x128xf32>
    %82 = arith.addf %67, %68 : vector<16x128xf32>
    %cst_15 = arith.constant 8.99999984E-4 : f32
    %83 = vector.broadcast %cst_15 : f32 to vector<16x128xf32>
    %84 = arith.addf %82, %83 : vector<16x128xf32>
    %85 = arith.mulf %81, %84 : vector<16x128xf32>
    %86 = arith.divf %78, %85 : vector<16x128xf32>
    %87 = arith.subf %2, %3 : vector<8x16x16xf32>
    %88 = math.absf %87 : vector<8x16x16xf32>
    %cst_16 = arith.constant 5.000000e-02 : f32
    %89 = vector.broadcast %cst_16 : f32 to vector<8x16x16xf32>
    %90 = arith.cmpf olt, %88, %89 : vector<8x16x16xf32>
    %91 = arith.extui %90 : vector<8x16x16xi1> to vector<8x16x16xi32>
    %92 = arith.sitofp %91 : vector<8x16x16xi32> to vector<8x16x16xf32>
    %93 = vector.shape_cast %86 : vector<16x128xf32> to vector<1x16x128xf32>
    %cst_17 = arith.constant dense<0.000000e+00> : vector<1xf32>
    %94 = vector.multi_reduction <add>, %93, %cst_17 [1, 2] : vector<1x16x128xf32> to vector<1xf32>
    %95 = vector.shape_cast %94 : vector<1xf32> to vector<1x1x1xf32>
    %96 = vector.extract %95[0, 0, 0] : f32 from vector<1x1x1xf32>
    %97 = vector.broadcast %96 : f32 to vector<1x8x128xf32>
    %c0_18 = arith.constant 0 : index
    %c0_19 = arith.constant 0 : index
    %c0_20 = arith.constant 0 : index
    %98 = vector.load %arg5[%c0_18, %c0_19, %c0_20] : memref<1x8x128xf32, #tpu.memory_space<vmem>>, vector<1x8x128xf32>
    tpu.vector_store %arg5[%c0_18, %c0_19, %c0_20], %97 {strides = array<i32>} : memref<1x8x128xf32, #tpu.memory_space<vmem>>, vector<1x8x128xf32>,
    %99 = vector.shape_cast %92 : vector<8x16x16xf32> to vector<1x8x16x16xf32>
    %cst_21 = arith.constant dense<0.000000e+00> : vector<1xf32>
    %100 = vector.multi_reduction <add>, %99, %cst_21 [1, 2, 3] : vector<1x8x16x16xf32> to vector<1xf32>
    %101 = vector.shape_cast %100 : vector<1xf32> to vector<1x1x1x1xf32>
    %102 = vector.extract %101[0, 0, 0, 0] : f32 from vector<1x1x1x1xf32>
    %103 = vector.broadcast %102 : f32 to vector<1x8x128xf32>
    %c0_22 = arith.constant 0 : index
    %c0_23 = arith.constant 0 : index
    %c0_24 = arith.constant 0 : index
    %104 = vector.load %arg6[%c0_22, %c0_23, %c0_24] : memref<1x8x128xf32, #tpu.memory_space<vmem>>, vector<1x8x128xf32>
    tpu.vector_store %arg6[%c0_22, %c0_23, %c0_24], %103 {strides = array<i32>} : memref<1x8x128xf32, #tpu.memory_space<vmem>>, vector<1x8x128xf32>,
    return
  }
  func.func @transform_0(%arg0: i32) -> (i32, i32, i32) {
    %c0_i32 = arith.constant 0 : i32
    %c0_i32_0 = arith.constant 0 : i32
    %c0_i32_1 = arith.constant 0 : i32
    return %arg0, %c0_i32, %c0_i32_0 : i32, i32, i32
  }
  func.func @transform_1(%arg0: i32) -> (i32, i32, i32) {
    %c0_i32 = arith.constant 0 : i32
    %c0_i32_0 = arith.constant 0 : i32
    %c0_i32_1 = arith.constant 0 : i32
    return %arg0, %c0_i32, %c0_i32_0 : i32, i32, i32
  }
  func.func @transform_2(%arg0: i32) -> (i32, i32) {
    %c0_i32 = arith.constant 0 : i32
    %c0_i32_0 = arith.constant 0 : i32
    %c0_i32_1 = arith.constant 0 : i32
    return %c0_i32, %c0_i32_0 : i32, i32
  }
  func.func @transform_3(%arg0: i32) -> (i32, i32) {
    %c0_i32 = arith.constant 0 : i32
    %c0_i32_0 = arith.constant 0 : i32
    %c0_i32_1 = arith.constant 0 : i32
    return %c0_i32, %c0_i32_0 : i32, i32
  }
  func.func @transform_4(%arg0: i32) -> (i32, i32, i32) {
    %c0_i32 = arith.constant 0 : i32
    %c0_i32_0 = arith.constant 0 : i32
    %c0_i32_1 = arith.constant 0 : i32
    return %arg0, %c0_i32, %c0_i32_0 : i32, i32, i32
  }
  func.func @transform_5(%arg0: i32) -> (i32, i32, i32) {
    %c0_i32 = arith.constant 0 : i32
    %c0_i32_0 = arith.constant 0 : i32
    %c0_i32_1 = arith.constant 0 : i32
    return %arg0, %c0_i32, %c0_i32_0 : i32, i32, i32
  }
}

</mosaic_0001>

<llo_original>
// kernel: tpu_custom_call.1
$region0: #{tpu_custom_call.1}
  #allocation0 [shape = 'u32[]', space=smem, size = 0x4, offset = 0x4, fixed_abs, tag = 'smem constant byte address 0x4 - core index']
  #allocation1 [shape = 'u32[72,128]{1,0:T(1,128)}', space=vmem, size = 0x9000, scoped, tag = 'internal scratch']
  %s0 = inlined_call_operand.hbm [shape: f32[8,16,16], index: 0, kind: input, shape index: {}]
  %s1 = inlined_call_operand.hbm [shape: f32[8,16,16], index: 1, kind: input, shape index: {}]
  %s2 = inlined_call_operand.hbm [shape: f32[16,16], index: 2, kind: input, shape index: {}]
  %s3 = inlined_call_operand.hbm [shape: f32[16,16], index: 3, kind: input, shape index: {}]
  %s4 = inlined_call_operand.hbm [shape: f32[1,8,128], index: 4, kind: output, shape index: {0}]
  %s5 = inlined_call_operand.hbm [shape: f32[1,8,128], index: 5, kind: output, shape index: {1}]
  %6 = xla_tuple %s4, %s5
  %s7 = sld [smem:[#allocation0]]
  $region50: #{tpu_custom_call.1} parent=0
    _
  %s9 = ssub.s32 1, %s7
  %s10 = scalar_select 0, %s9, %s7
  $region1: #{tpu_custom_call.1} parent=0
    #allocation2 [shape = 'u8[65536]{0}', space=vmem, size = 0x10000, scoped, tag = 'input window, operand 0, single buffered']
    #allocation3 [shape = 's32[1]{0}', space=sflag, size = 0x4, scoped, tag = 'scoped memory for tpu_custom_call.1']
    #allocation4 [shape = 's32[1]{0}', space=sflag, size = 0x4, scoped, tag = 'scoped memory for tpu_custom_call.1']
    #allocation5 [shape = 'u8[65536]{0}', space=vmem, size = 0x10000, scoped, tag = 'input window, operand 1, single buffered']
    #allocation6 [shape = 's32[1]{0}', space=sflag, size = 0x4, scoped, tag = 'scoped memory for tpu_custom_call.1']
    #allocation7 [shape = 'u8[8192]{0}', space=vmem, size = 0x2000, scoped, tag = 'input window, operand 2, single buffered']
    #allocation8 [shape = 'u8[8192]{0}', space=vmem, size = 0x2000, scoped, tag = 'input window, operand 3, single buffered']
    #allocation9 [shape = 's32[1]{0}', space=sflag, size = 0x4, scoped, tag = 'scoped memory for tpu_custom_call.1']
    #allocation10 [shape = 'u8[4096]{0}', space=vmem, size = 0x1000, scoped, tag = 'output window, operand 0, single buffered']
    #allocation11 [shape = 'u8[4096]{0}', space=vmem, size = 0x1000, scoped, tag = 'output window, operand 1, single buffered']
    #allocation12 [shape = 's32[1]{0}', space=sflag, size = 0x4, scoped, tag = 'scoped memory for tpu_custom_call.1']
    %11 = vsyncpa [#allocation3], 0
    %12 = vsyncpa [#allocation6], 0
    %13 = vsyncpa [#allocation9], 0
    %14 = vsyncpa [#allocation4], 0
    %15 = vsyncpa [#allocation12], 0
    // Predicated region
    $region2: #{tpu_custom_call.1} parent=1 // pred_check
      _
    $region3: #{tpu_custom_call.1} parent=1 // pred_check_branch
      %17 = sbr.rel (0) target = $region5
    $region4: #{tpu_custom_call.1} parent=1 // pred_region
      %19 = vsyncadd [#allocation3], 0
      %s20 = sshll.u32 %s0, 4
      %s21 = int_to_ptr.hbm [resolvable:$true] %s20
      %s22 = sshll.u32 [#allocation2], 4
      %s23 = int_to_ptr.vmem [resolvable:$true] %s22
      %28 = dma.hbm_to_vmem [thread:$0]  %s21, 2048, %s23, [#allocation3], 128, 128, 8
    $region5: #{tpu_custom_call.1} parent=1 // pred_fallthru
      _
    // Predicated region
    $region6: #{tpu_custom_call.1} parent=1 // pred_check
      _
    $region7: #{tpu_custom_call.1} parent=1 // pred_check_branch
      %30 = sbr.rel (0) target = $region9
    $region8: #{tpu_custom_call.1} parent=1 // pred_region
      %32 = vsyncadd [#allocation6], 0
      %s33 = sshll.u32 %s1, 4
      %s34 = int_to_ptr.hbm [resolvable:$true] %s33
      %s35 = sshll.u32 [#allocation5], 4
      %s36 = int_to_ptr.vmem [resolvable:$true] %s35
      %41 = dma.hbm_to_vmem [thread:$0]  %s34, 2048, %s36, [#allocation6], 128, 128, 8
    $region9: #{tpu_custom_call.1} parent=1 // pred_fallthru
      _
    // Predicated region
    $region10: #{tpu_custom_call.1} parent=1 // pred_check
      _
    $region11: #{tpu_custom_call.1} parent=1 // pred_check_branch
      %43 = sbr.rel (0) target = $region13
    $region12: #{tpu_custom_call.1} parent=1 // pred_region
      %45 = vsyncadd [#allocation6], 0
      %s46 = sshll.u32 %s2, 4
      %s47 = int_to_ptr.hbm [resolvable:$true] %s46
      %s48 = sshll.u32 [#allocation7], 4
      %s49 = int_to_ptr.vmem [resolvable:$true] %s48
      %54 = dma.hbm_to_vmem [thread:$0]  %s47, 256, %s49, [#allocation6], 128, 128, 8
    $region13: #{tpu_custom_call.1} parent=1 // pred_fallthru
      _
    // Predicated region
    $region14: #{tpu_custom_call.1} parent=1 // pred_check
      _
    $region15: #{tpu_custom_call.1} parent=1 // pred_check_branch
      %56 = sbr.rel (0) target = $region17
    $region16: #{tpu_custom_call.1} parent=1 // pred_region
      %58 = vsyncadd [#allocation9], 0
      %s59 = sshll.u32 %s3, 4
      %s60 = int_to_ptr.hbm [resolvable:$true] %s59
      %s61 = sshll.u32 [#allocation8], 4
      %s62 = int_to_ptr.vmem [resolvable:$true] %s61
      %67 = dma.hbm_to_vmem [thread:$0]  %s60, 256, %s62, [#allocation9], 128, 128, 8
    $region17: #{tpu_custom_call.1} parent=1 // pred_fallthru
      _
    // Predicated region
    $region18: #{tpu_custom_call.1} parent=1 // pred_check
      _
    $region19: #{tpu_custom_call.1} parent=1 // pred_check_branch
      %69 = sbr.rel (0) target = $region21
    $region20: #{tpu_custom_call.1} parent=1 // pred_region
      %71 = dma.done [#allocation3], 2048
    $region21: #{tpu_custom_call.1} parent=1 // pred_fallthru
      _
    // Predicated region
    $region22: #{tpu_custom_call.1} parent=1 // pred_check
      _
    $region23: #{tpu_custom_call.1} parent=1 // pred_check_branch
      %73 = sbr.rel (0) target = $region25
    $region24: #{tpu_custom_call.1} parent=1 // pred_region
      %75 = dma.done [#allocation6], 2048
    $region25: #{tpu_custom_call.1} parent=1 // pred_fallthru
      _
    // Predicated region
    $region26: #{tpu_custom_call.1} parent=1 // pred_check
      _
    $region27: #{tpu_custom_call.1} parent=1 // pred_check_branch
      %77 = sbr.rel (0) target = $region29
    $region28: #{tpu_custom_call.1} parent=1 // pred_region
      %79 = dma.done [#allocation6], 256
    $region29: #{tpu_custom_call.1} parent=1 // pred_fallthru
      _
    // Predicated region
    $region30: #{tpu_custom_call.1} parent=1 // pred_check
      _
    $region31: #{tpu_custom_call.1} parent=1 // pred_check_branch
      %81 = sbr.rel (0) target = $region33
    $region32: #{tpu_custom_call.1} parent=1 // pred_region
      %83 = dma.done [#allocation9], 256
    $region33: #{tpu_custom_call.1} parent=1 // pred_fallthru
      _
    %v84 = vld [vmem:[#allocation7] sm:$0xff]
    %v85 = vld [vmem:[#allocation7 + $0x8] sm:$0xff]
    %v86 = vld [vmem:[#allocation8] sm:$0xff]
    %v87 = vld [vmem:[#allocation8 + $0x8] sm:$0xff]
    %v88 = vld [vmem:[#allocation2] sm:$0xff]
    %v89 = vld [vmem:[#allocation2 + $0x8] sm:$0xff]
    %v90 = vld [vmem:[#allocation2 + $0x10] sm:$0xff]
    %v91 = vld [vmem:[#allocation2 + $0x18] sm:$0xff]
    %v92 = vld [vmem:[#allocation2 + $0x20] sm:$0xff]
    %v93 = vld [vmem:[#allocation2 + $0x28] sm:$0xff]
    %v94 = vld [vmem:[#allocation2 + $0x30] sm:$0xff]
    %v95 = vld [vmem:[#allocation2 + $0x38] sm:$0xff]
    %v96 = vld [vmem:[#allocation2 + $0x40] sm:$0xff]
    %v97 = vld [vmem:[#allocation2 + $0x48] sm:$0xff]
    %v98 = vld [vmem:[#allocation2 + $0x50] sm:$0xff]
    %v99 = vld [vmem:[#allocation2 + $0x58] sm:$0xff]
    %v100 = vld [vmem:[#allocation2 + $0x60] sm:$0xff]
    %v101 = vld [vmem:[#allocation2 + $0x68] sm:$0xff]
    %v102 = vld [vmem:[#allocation2 + $0x70] sm:$0xff]
    %v103 = vld [vmem:[#allocation2 + $0x78] sm:$0xff]
    %v104 = vld [vmem:[#allocation5] sm:$0xff]
    %v105 = vld [vmem:[#allocation5 + $0x8] sm:$0xff]
    %v106 = vld [vmem:[#allocation5 + $0x10] sm:$0xff]
    %v107 = vld [vmem:[#allocation5 + $0x18] sm:$0xff]
    %v108 = vld [vmem:[#allocation5 + $0x20] sm:$0xff]
    %v109 = vld [vmem:[#allocation5 + $0x28] sm:$0xff]
    %v110 = vld [vmem:[#allocation5 + $0x30] sm:$0xff]
    %v111 = vld [vmem:[#allocation5 + $0x38] sm:$0xff]
    %v112 = vld [vmem:[#allocation5 + $0x40] sm:$0xff]
    %v113 = vld [vmem:[#allocation5 + $0x48] sm:$0xff]
    %v114 = vld [vmem:[#allocation5 + $0x50] sm:$0xff]
    %v115 = vld [vmem:[#allocation5 + $0x58] sm:$0xff]
    %v116 = vld [vmem:[#allocation5 + $0x60] sm:$0xff]
    %v117 = vld [vmem:[#allocation5 + $0x68] sm:$0xff]
    %v118 = vld [vmem:[#allocation5 + $0x70] sm:$0xff]
    %v119 = vld [vmem:[#allocation5 + $0x78] sm:$0xff]
    %v120 = vmul.f32 %v88, %v88
    %v121 = vmul.f32 %v89, %v89
    %v122 = vmul.f32 %v90, %v90
    %v123 = vmul.f32 %v91, %v91
    %v124 = vmul.f32 %v92, %v92
    %v125 = vmul.f32 %v93, %v93
    %v126 = vmul.f32 %v94, %v94
    %v127 = vmul.f32 %v95, %v95
    %v128 = vmul.f32 %v96, %v96
    %v129 = vmul.f32 %v97, %v97
    %v130 = vmul.f32 %v98, %v98
    %v131 = vmul.f32 %v99, %v99
    %v132 = vmul.f32 %v100, %v100
    %v133 = vmul.f32 %v101, %v101
    %v134 = vmul.f32 %v102, %v102
    %v135 = vmul.f32 %v103, %v103
    %v136 = vmul.f32 %v104, %v104
    %v137 = vmul.f32 %v105, %v105
    %v138 = vmul.f32 %v106, %v106
    %v139 = vmul.f32 %v107, %v107
    %v140 = vmul.f32 %v108, %v108
    %v141 = vmul.f32 %v109, %v109
    %v142 = vmul.f32 %v110, %v110
    %v143 = vmul.f32 %v111, %v111
    %v144 = vmul.f32 %v112, %v112
    %v145 = vmul.f32 %v113, %v113
    %v146 = vmul.f32 %v114, %v114
    %v147 = vmul.f32 %v115, %v115
    %v148 = vmul.f32 %v116, %v116
    %v149 = vmul.f32 %v117, %v117
    %v150 = vmul.f32 %v118, %v118
    %v151 = vmul.f32 %v119, %v119
    %v152 = vmul.f32 %v88, %v104
    %v153 = vmul.f32 %v89, %v105
    %v154 = vmul.f32 %v90, %v106
    %v155 = vmul.f32 %v91, %v107
    %v156 = vmul.f32 %v92, %v108
    %v157 = vmul.f32 %v93, %v109
    %v158 = vmul.f32 %v94, %v110
    %v159 = vmul.f32 %v95, %v111
    %v160 = vmul.f32 %v96, %v112
    %v161 = vmul.f32 %v97, %v113
    %v162 = vmul.f32 %v98, %v114
    %v163 = vmul.f32 %v99, %v115
    %v164 = vmul.f32 %v100, %v116
    %v165 = vmul.f32 %v101, %v117
    %v166 = vmul.f32 %v102, %v118
    %v167 = vmul.f32 %v103, %v119
    %vm168 = vcmask 130048
    %v170 = vsel %vm168, %v88, 0
    %v173 = vsel %vm168, %v89, 0
    %v176 = vsel %vm168, %v90, 0
    %v179 = vsel %vm168, %v91, 0
    %v182 = vsel %vm168, %v92, 0
    %v185 = vsel %vm168, %v93, 0
    %v188 = vsel %vm168, %v94, 0
    %v191 = vsel %vm168, %v95, 0
    %v194 = vsel %vm168, %v96, 0
    %v197 = vsel %vm168, %v97, 0
    %v200 = vsel %vm168, %v98, 0
    %v203 = vsel %vm168, %v99, 0
    %v206 = vsel %vm168, %v100, 0
    %v209 = vsel %vm168, %v101, 0
    %v212 = vsel %vm168, %v102, 0
    %v215 = vsel %vm168, %v103, 0
    %v218 = vsel %vm168, %v104, 0
    %v221 = vsel %vm168, %v105, 0
    %v224 = vsel %vm168, %v106, 0
    %v227 = vsel %vm168, %v107, 0
    %v230 = vsel %vm168, %v108, 0
    %v233 = vsel %vm168, %v109, 0
    %v236 = vsel %vm168, %v110, 0
    %v239 = vsel %vm168, %v111, 0
    %v242 = vsel %vm168, %v112, 0
    %v245 = vsel %vm168, %v113, 0
    %v248 = vsel %vm168, %v114, 0
    %v251 = vsel %vm168, %v115, 0
    %v254 = vsel %vm168, %v116, 0
    %v257 = vsel %vm168, %v117, 0
    %v260 = vsel %vm168, %v118, 0
    %v263 = vsel %vm168, %v119, 0
    %v266 = vsel %vm168, %v120, 0
    %v269 = vsel %vm168, %v121, 0
    %v272 = vsel %vm168, %v122, 0
    %v275 = vsel %vm168, %v123, 0
    %v278 = vsel %vm168, %v124, 0
    %v281 = vsel %vm168, %v125, 0
    %v284 = vsel %vm168, %v126, 0
    %v287 = vsel %vm168, %v127, 0
    %v290 = vsel %vm168, %v128, 0
    %v293 = vsel %vm168, %v129, 0
    %v296 = vsel %vm168, %v130, 0
    %v299 = vsel %vm168, %v131, 0
    %v302 = vsel %vm168, %v132, 0
    %v305 = vsel %vm168, %v133, 0
    %v308 = vsel %vm168, %v134, 0
    %v311 = vsel %vm168, %v135, 0
    %v314 = vsel %vm168, %v136, 0
    %v317 = vsel %vm168, %v137, 0
    %v320 = vsel %vm168, %v138, 0
    %v323 = vsel %vm168, %v139, 0
    %v326 = vsel %vm168, %v140, 0
    %v329 = vsel %vm168, %v141, 0
    %v332 = vsel %vm168, %v142, 0
    %v335 = vsel %vm168, %v143, 0
    %v338 = vsel %vm168, %v144, 0
    %v341 = vsel %vm168, %v145, 0
    %v344 = vsel %vm168, %v146, 0
    %v347 = vsel %vm168, %v147, 0
    %v350 = vsel %vm168, %v148, 0
    %v353 = vsel %vm168, %v149, 0
    %v356 = vsel %vm168, %v150, 0
    %v359 = vsel %vm168, %v151, 0
    %v362 = vsel %vm168, %v152, 0
    %v365 = vsel %vm168, %v153, 0
    %v368 = vsel %vm168, %v154, 0
    %v371 = vsel %vm168, %v155, 0
    %v374 = vsel %vm168, %v156, 0
    %v377 = vsel %vm168, %v157, 0
    %v380 = vsel %vm168, %v158, 0
    %v383 = vsel %vm168, %v159, 0
    %v386 = vsel %vm168, %v160, 0
    %v389 = vsel %vm168, %v161, 0
    %v392 = vsel %vm168, %v162, 0
    %v395 = vsel %vm168, %v163, 0
    %v398 = vsel %vm168, %v164, 0
    %v401 = vsel %vm168, %v165, 0
    %v404 = vsel %vm168, %v166, 0
    %v407 = vsel %vm168, %v167, 0
    %409 = vmatpush.msra.mxu0 0.0
    %410 = vmatpush.msra.mxu0 0.0
    %411 = vmatpush.msra.mxu0 0.0
    %412 = vmatpush.msra.mxu0 0.0
    %413 = vmatpush.msra.mxu0 0.0
    %414 = vmatpush.msra.mxu0 0.0
    %415 = vmatpush.msra.mxu0 0.0
    %416 = vmatpush.msra.mxu0 0.0
    %417 = vmatpush.msra.mxu0 0.0
    %418 = vmatpush.msra.mxu0 0.0
    %419 = vmatpush.msra.mxu0 0.0
    %420 = vmatpush.msra.mxu0 0.0
    %421 = vmatpush.msra.mxu0 0.0
    %422 = vmatpush.msra.mxu0 0.0
    %423 = vmatpush.msra.mxu0 %v87
    %424 = vmatpush.msra.mxu0 %v86
    %425 = vmatmul.f32.gmra.mxu0 %v170
    %v426 = vpop.f32.mrf.mxu0
    %v427 = vadd.f32 0.0, %v426
    %428 = vmatmul.f32.gmra.mxu0 %v173
    %v429 = vpop.f32.mrf.mxu0
    %v430 = vadd.f32 0.0, %v429
    %431 = vmatmul.f32.gmra.mxu0 %v176
    %v432 = vpop.f32.mrf.mxu0
    %v433 = vadd.f32 0.0, %v432
    %434 = vmatmul.f32.gmra.mxu0 %v179
    %v435 = vpop.f32.mrf.mxu0
    %v436 = vadd.f32 0.0, %v435
    %437 = vmatmul.f32.gmra.mxu0 %v182
    %v438 = vpop.f32.mrf.mxu0
    %v439 = vadd.f32 0.0, %v438
    %440 = vmatmul.f32.gmra.mxu0 %v185
    %v441 = vpop.f32.mrf.mxu0
    %v442 = vadd.f32 0.0, %v441
    %443 = vmatmul.f32.gmra.mxu0 %v188
    %v444 = vpop.f32.mrf.mxu0
    %v445 = vadd.f32 0.0, %v444
    %446 = vmatmul.f32.gmra.mxu0 %v191
    %v447 = vpop.f32.mrf.mxu0
    %v448 = vadd.f32 0.0, %v447
    %449 = vmatmul.f32.gmra.mxu0 %v194
    %v450 = vpop.f32.mrf.mxu0
    %v451 = vadd.f32 0.0, %v450
    %452 = vmatmul.f32.gmra.mxu0 %v197
    %v453 = vpop.f32.mrf.mxu0
    %v454 = vadd.f32 0.0, %v453
    %455 = vmatmul.f32.gmra.mxu0 %v200
    %v456 = vpop.f32.mrf.mxu0
    %v457 = vadd.f32 0.0, %v456
    %458 = vmatmul.f32.gmra.mxu0 %v203
    %v459 = vpop.f32.mrf.mxu0
    %v460 = vadd.f32 0.0, %v459
    %461 = vmatmul.f32.gmra.mxu0 %v206
    %v462 = vpop.f32.mrf.mxu0
    %v463 = vadd.f32 0.0, %v462
    %464 = vmatmul.f32.gmra.mxu0 %v209
    %v465 = vpop.f32.mrf.mxu0
    %v466 = vadd.f32 0.0, %v465
    %467 = vmatmul.f32.gmra.mxu0 %v212
    %v468 = vpop.f32.mrf.mxu0
    %v469 = vadd.f32 0.0, %v468
    %470 = vmatmul.f32.gmra.mxu0 %v215
    %v471 = vpop.f32.mrf.mxu0
    %v472 = vadd.f32 0.0, %v471
    %473 = vmatmul.f32.gmra.mxu0 %v218
    %v474 = vpop.f32.mrf.mxu0
    %v475 = vadd.f32 0.0, %v474
    %476 = vmatmul.f32.gmra.mxu0 %v221
    %v477 = vpop.f32.mrf.mxu0
    %v478 = vadd.f32 0.0, %v477
    %479 = vmatmul.f32.gmra.mxu0 %v224
    %v480 = vpop.f32.mrf.mxu0
    %v481 = vadd.f32 0.0, %v480
    %482 = vmatmul.f32.gmra.mxu0 %v227
    %v483 = vpop.f32.mrf.mxu0
    %v484 = vadd.f32 0.0, %v483
    %485 = vmatmul.f32.gmra.mxu0 %v230
    %v486 = vpop.f32.mrf.mxu0
    %v487 = vadd.f32 0.0, %v486
    %488 = vmatmul.f32.gmra.mxu0 %v233
    %v489 = vpop.f32.mrf.mxu0
    %v490 = vadd.f32 0.0, %v489
    %491 = vmatmul.f32.gmra.mxu0 %v236
    %v492 = vpop.f32.mrf.mxu0
    %v493 = vadd.f32 0.0, %v492
    %494 = vmatmul.f32.gmra.mxu0 %v239
    %v495 = vpop.f32.mrf.mxu0
    %v496 = vadd.f32 0.0, %v495
    %497 = vmatmul.f32.gmra.mxu0 %v242
    %v498 = vpop.f32.mrf.mxu0
    %v499 = vadd.f32 0.0, %v498
    %500 = vmatmul.f32.gmra.mxu0 %v245
    %v501 = vpop.f32.mrf.mxu0
    %v502 = vadd.f32 0.0, %v501
    %503 = vmatmul.f32.gmra.mxu0 %v248
    %v504 = vpop.f32.mrf.mxu0
    %v505 = vadd.f32 0.0, %v504
    %506 = vmatmul.f32.gmra.mxu0 %v251
    %v507 = vpop.f32.mrf.mxu0
    %v508 = vadd.f32 0.0, %v507
    %509 = vmatmul.f32.gmra.mxu0 %v254
    %v510 = vpop.f32.mrf.mxu0
    %v511 = vadd.f32 0.0, %v510
    %512 = vmatmul.f32.gmra.mxu0 %v257
    %v513 = vpop.f32.mrf.mxu0
    %v514 = vadd.f32 0.0, %v513
    %515 = vmatmul.f32.gmra.mxu0 %v260
    %v516 = vpop.f32.mrf.mxu0
    %v517 = vadd.f32 0.0, %v516
    %518 = vmatmul.f32.gmra.mxu0 %v263
    %v519 = vpop.f32.mrf.mxu0
    %v520 = vadd.f32 0.0, %v519
    %521 = vmatmul.f32.gmra.mxu0 %v266
    %v522 = vpop.f32.mrf.mxu0
    %v523 = vadd.f32 0.0, %v522
    %524 = vmatmul.f32.gmra.mxu0 %v269
    %v525 = vpop.f32.mrf.mxu0
    %v526 = vadd.f32 0.0, %v525
    %527 = vmatmul.f32.gmra.mxu0 %v272
    %v528 = vpop.f32.mrf.mxu0
    %v529 = vadd.f32 0.0, %v528
    %530 = vmatmul.f32.gmra.mxu0 %v275
    %v531 = vpop.f32.mrf.mxu0
    %v532 = vadd.f32 0.0, %v531
    %533 = vmatmul.f32.gmra.mxu0 %v278
    %v534 = vpop.f32.mrf.mxu0
    %v535 = vadd.f32 0.0, %v534
    %536 = vmatmul.f32.gmra.mxu0 %v281
    %v537 = vpop.f32.mrf.mxu0
    %v538 = vadd.f32 0.0, %v537
    %539 = vmatmul.f32.gmra.mxu0 %v284
    %v540 = vpop.f32.mrf.mxu0
    %v541 = vadd.f32 0.0, %v540
    %542 = vmatmul.f32.gmra.mxu0 %v287
    %v543 = vpop.f32.mrf.mxu0
    %v544 = vadd.f32 0.0, %v543
    %545 = vmatmul.f32.gmra.mxu0 %v290
    %v546 = vpop.f32.mrf.mxu0
    %v547 = vadd.f32 0.0, %v546
    %548 = vmatmul.f32.gmra.mxu0 %v293
    %v549 = vpop.f32.mrf.mxu0
    %v550 = vadd.f32 0.0, %v549
    %551 = vmatmul.f32.gmra.mxu0 %v296
    %v552 = vpop.f32.mrf.mxu0
    %v553 = vadd.f32 0.0, %v552
    %554 = vmatmul.f32.gmra.mxu0 %v299
    %v555 = vpop.f32.mrf.mxu0
    %v556 = vadd.f32 0.0, %v555
    %557 = vmatmul.f32.gmra.mxu0 %v302
    %v558 = vpop.f32.mrf.mxu0
    %v559 = vadd.f32 0.0, %v558
    %560 = vmatmul.f32.gmra.mxu0 %v305
    %v561 = vpop.f32.mrf.mxu0
    %v562 = vadd.f32 0.0, %v561
    %563 = vmatmul.f32.gmra.mxu0 %v308
    %v564 = vpop.f32.mrf.mxu0
    %v565 = vadd.f32 0.0, %v564
    %566 = vmatmul.f32.gmra.mxu0 %v311
    %v567 = vpop.f32.mrf.mxu0
    %v568 = vadd.f32 0.0, %v567
    %569 = vmatmul.f32.gmra.mxu0 %v314
    %v570 = vpop.f32.mrf.mxu0
    %v571 = vadd.f32 0.0, %v570
    %572 = vmatmul.f32.gmra.mxu0 %v317
    %v573 = vpop.f32.mrf.mxu0
    %v574 = vadd.f32 0.0, %v573
    %575 = vmatmul.f32.gmra.mxu0 %v320
    %v576 = vpop.f32.mrf.mxu0
    %v577 = vadd.f32 0.0, %v576
    %578 = vmatmul.f32.gmra.mxu0 %v323
    %v579 = vpop.f32.mrf.mxu0
    %v580 = vadd.f32 0.0, %v579
    %581 = vmatmul.f32.gmra.mxu0 %v326
    %v582 = vpop.f32.mrf.mxu0
    %v583 = vadd.f32 0.0, %v582
    %584 = vmatmul.f32.gmra.mxu0 %v329
    %v585 = vpop.f32.mrf.mxu0
    %v586 = vadd.f32 0.0, %v585
    %587 = vmatmul.f32.gmra.mxu0 %v332
    %v588 = vpop.f32.mrf.mxu0
    %v589 = vadd.f32 0.0, %v588
    %590 = vmatmul.f32.gmra.mxu0 %v335
    %v591 = vpop.f32.mrf.mxu0
    %v592 = vadd.f32 0.0, %v591
    %593 = vmatmul.f32.gmra.mxu0 %v338
    %v594 = vpop.f32.mrf.mxu0
    %v595 = vadd.f32 0.0, %v594
    %596 = vmatmul.f32.gmra.mxu0 %v341
    %v597 = vpop.f32.mrf.mxu0
    %v598 = vadd.f32 0.0, %v597
    %599 = vmatmul.f32.gmra.mxu0 %v344
    %v600 = vpop.f32.mrf.mxu0
    %v601 = vadd.f32 0.0, %v600
    %602 = vmatmul.f32.gmra.mxu0 %v347
    %v603 = vpop.f32.mrf.mxu0
    %v604 = vadd.f32 0.0, %v603
    %605 = vmatmul.f32.gmra.mxu0 %v350
    %v606 = vpop.f32.mrf.mxu0
    %v607 = vadd.f32 0.0, %v606
    %608 = vmatmul.f32.gmra.mxu0 %v353
    %v609 = vpop.f32.mrf.mxu0
    %v610 = vadd.f32 0.0, %v609
    %611 = vmatmul.f32.gmra.mxu0 %v356
    %v612 = vpop.f32.mrf.mxu0
    %v613 = vadd.f32 0.0, %v612
    %614 = vmatmul.f32.gmra.mxu0 %v359
    %v615 = vpop.f32.mrf.mxu0
    %v616 = vadd.f32 0.0, %v615
    %617 = vmatmul.f32.gmra.mxu0 %v362
    %v618 = vpop.f32.mrf.mxu0
    %v619 = vadd.f32 0.0, %v618
    %620 = vmatmul.f32.gmra.mxu0 %v365
    %v621 = vpop.f32.mrf.mxu0
    %v622 = vadd.f32 0.0, %v621
    %623 = vmatmul.f32.gmra.mxu0 %v368
    %v624 = vpop.f32.mrf.mxu0
    %v625 = vadd.f32 0.0, %v624
    %626 = vmatmul.f32.gmra.mxu0 %v371
    %v627 = vpop.f32.mrf.mxu0
    %v628 = vadd.f32 0.0, %v627
    %629 = vmatmul.f32.gmra.mxu0 %v374
    %v630 = vpop.f32.mrf.mxu0
    %v631 = vadd.f32 0.0, %v630
    %632 = vmatmul.f32.gmra.mxu0 %v377
    %v633 = vpop.f32.mrf.mxu0
    %v634 = vadd.f32 0.0, %v633
    %635 = vmatmul.f32.gmra.mxu0 %v380
    %v636 = vpop.f32.mrf.mxu0
    %v637 = vadd.f32 0.0, %v636
    %638 = vmatmul.f32.gmra.mxu0 %v383
    %v639 = vpop.f32.mrf.mxu0
    %v640 = vadd.f32 0.0, %v639
    %641 = vmatmul.f32.gmra.mxu0 %v386
    %v642 = vpop.f32.mrf.mxu0
    %v643 = vadd.f32 0.0, %v642
    %644 = vmatmul.f32.gmra.mxu0 %v389
    %v645 = vpop.f32.mrf.mxu0
    %v646 = vadd.f32 0.0, %v645
    %647 = vmatmul.f32.gmra.mxu0 %v392
    %v648 = vpop.f32.mrf.mxu0
    %v649 = vadd.f32 0.0, %v648
    %650 = vmatmul.f32.gmra.mxu0 %v395
    %v651 = vpop.f32.mrf.mxu0
    %v652 = vadd.f32 0.0, %v651
    %653 = vmatmul.f32.gmra.mxu0 %v398
    %v654 = vpop.f32.mrf.mxu0
    %v655 = vadd.f32 0.0, %v654
    %656 = vmatmul.f32.gmra.mxu0 %v401
    %v657 = vpop.f32.mrf.mxu0
    %v658 = vadd.f32 0.0, %v657
    %659 = vmatmul.f32.gmra.mxu0 %v404
    %v660 = vpop.f32.mrf.mxu0
    %v661 = vadd.f32 0.0, %v660
    %662 = vmatmul.f32.gmra.mxu0 %v407
    %v663 = vpop.f32.mrf.mxu0
    %v664 = vadd.f32 0.0, %v663
    %665 = vdwg.mxu0
    %668 = vrot.lane.b32.xlu0 %v433, 16
    %v669 = vpop.permute.xlu0 %668
    %670 = vrot.lane.b32.xlu0 %v436, 16
    %v671 = vpop.permute.xlu0 %670
    %676 = vrot.lane.b32.xlu0 %v439, 32
    %v677 = vpop.permute.xlu0 %676
    %678 = vrot.lane.b32.xlu0 %v442, 32
    %v679 = vpop.permute.xlu0 %678
    %684 = vrot.lane.b32.xlu0 %v445, 48
    %v685 = vpop.permute.xlu0 %684
    %686 = vrot.lane.b32.xlu0 %v448, 48
    %v687 = vpop.permute.xlu0 %686
    %692 = vrot.lane.b32.xlu0 %v451, 64
    %v693 = vpop.permute.xlu0 %692
    %694 = vrot.lane.b32.xlu0 %v454, 64
    %v695 = vpop.permute.xlu0 %694
    %700 = vrot.lane.b32.xlu0 %v457, 80
    %v701 = vpop.permute.xlu0 %700
    %702 = vrot.lane.b32.xlu0 %v460, 80
    %v703 = vpop.permute.xlu0 %702
    %708 = vrot.lane.b32.xlu0 %v463, 96
    %v709 = vpop.permute.xlu0 %708
    %710 = vrot.lane.b32.xlu0 %v466, 96
    %v711 = vpop.permute.xlu0 %710
    %716 = vrot.lane.b32.xlu0 %v469, 112
    %v717 = vpop.permute.xlu0 %716
    %718 = vrot.lane.b32.xlu0 %v472, 112
    %v719 = vpop.permute.xlu0 %718
    %724 = vrot.lane.b32.xlu0 %v481, 16
    %v725 = vpop.permute.xlu0 %724
    %726 = vrot.lane.b32.xlu0 %v484, 16
    %v727 = vpop.permute.xlu0 %726
    %732 = vrot.lane.b32.xlu0 %v487, 32
    %v733 = vpop.permute.xlu0 %732
    %734 = vrot.lane.b32.xlu0 %v490, 32
    %v735 = vpop.permute.xlu0 %734
    %740 = vrot.lane.b32.xlu0 %v493, 48
    %v741 = vpop.permute.xlu0 %740
    %742 = vrot.lane.b32.xlu0 %v496, 48
    %v743 = vpop.permute.xlu0 %742
    %748 = vrot.lane.b32.xlu0 %v499, 64
    %v749 = vpop.permute.xlu0 %748
    %750 = vrot.lane.b32.xlu0 %v502, 64
    %v751 = vpop.permute.xlu0 %750
    %756 = vrot.lane.b32.xlu0 %v505, 80
    %v757 = vpop.permute.xlu0 %756
    %758 = vrot.lane.b32.xlu0 %v508, 80
    %v759 = vpop.permute.xlu0 %758
    %764 = vrot.lane.b32.xlu0 %v511, 96
    %v765 = vpop.permute.xlu0 %764
    %766 = vrot.lane.b32.xlu0 %v514, 96
    %v767 = vpop.permute.xlu0 %766
    %772 = vrot.lane.b32.xlu0 %v517, 112
    %v773 = vpop.permute.xlu0 %772
    %774 = vrot.lane.b32.xlu0 %v520, 112
    %v775 = vpop.permute.xlu0 %774
    %v778 = vsel %vm168, %v427, %v669
    %v779 = vsel %vm168, %v430, %v671
    %vm780 = vcmask 261120
    %v781 = vsel %vm780, %v778, %v677
    %v782 = vsel %vm780, %v779, %v679
    %vm783 = vcmask 392192
    %v784 = vsel %vm783, %v781, %v685
    %v785 = vsel %vm783, %v782, %v687
    %vm786 = vcmask 523264
    %v787 = vsel %vm786, %v784, %v693
    %v788 = vsel %vm786, %v785, %v695
    %vm789 = vcmask 654336
    %v790 = vsel %vm789, %v787, %v701
    %v791 = vsel %vm789, %v788, %v703
    %vm792 = vcmask 785408
    %v793 = vsel %vm792, %v790, %v709
    %v794 = vsel %vm792, %v791, %v711
    %vm795 = vcmask 916480
    %v796 = vsel %vm795, %v793, %v717
    %v797 = vsel %vm795, %v794, %v719
    %v798 = vsel %vm168, %v475, %v725
    %v799 = vsel %vm168, %v478, %v727
    %v800 = vsel %vm780, %v798, %v733
    %v801 = vsel %vm780, %v799, %v735
    %v802 = vsel %vm783, %v800, %v741
    %v803 = vsel %vm783, %v801, %v743
    %v804 = vsel %vm786, %v802, %v749
    %v805 = vsel %vm786, %v803, %v751
    %v806 = vsel %vm789, %v804, %v757
    %v807 = vsel %vm789, %v805, %v759
    %v808 = vsel %vm792, %v806, %v765
    %v809 = vsel %vm792, %v807, %v767
    %v810 = vsel %vm795, %v808, %v773
    %v811 = vsel %vm795, %v809, %v775
    %814 = vrot.lane.b32.xlu0 %v529, 16
    %v815 = vpop.permute.xlu0 %814
    %816 = vrot.lane.b32.xlu0 %v532, 16
    %v817 = vpop.permute.xlu0 %816
    %822 = vrot.lane.b32.xlu0 %v535, 32
    %v823 = vpop.permute.xlu0 %822
    %824 = vrot.lane.b32.xlu0 %v538, 32
    %v825 = vpop.permute.xlu0 %824
    %830 = vrot.lane.b32.xlu0 %v541, 48
    %v831 = vpop.permute.xlu0 %830
    %832 = vrot.lane.b32.xlu0 %v544, 48
    %v833 = vpop.permute.xlu0 %832
    %838 = vrot.lane.b32.xlu0 %v547, 64
    %v839 = vpop.permute.xlu0 %838
    %840 = vrot.lane.b32.xlu0 %v550, 64
    %v841 = vpop.permute.xlu0 %840
    %846 = vrot.lane.b32.xlu0 %v553, 80
    %v847 = vpop.permute.xlu0 %846
    %848 = vrot.lane.b32.xlu0 %v556, 80
    %v849 = vpop.permute.xlu0 %848
    %854 = vrot.lane.b32.xlu0 %v559, 96
    %v855 = vpop.permute.xlu0 %854
    %856 = vrot.lane.b32.xlu0 %v562, 96
    %v857 = vpop.permute.xlu0 %856
    %862 = vrot.lane.b32.xlu0 %v565, 112
    %v863 = vpop.permute.xlu0 %862
    %864 = vrot.lane.b32.xlu0 %v568, 112
    %v865 = vpop.permute.xlu0 %864
    %870 = vrot.lane.b32.xlu0 %v577, 16
    %v871 = vpop.permute.xlu0 %870
    %872 = vrot.lane.b32.xlu0 %v580, 16
    %v873 = vpop.permute.xlu0 %872
    %878 = vrot.lane.b32.xlu0 %v583, 32
    %v879 = vpop.permute.xlu0 %878
    %880 = vrot.lane.b32.xlu0 %v586, 32
    %v881 = vpop.permute.xlu0 %880
    %886 = vrot.lane.b32.xlu0 %v589, 48
    %v887 = vpop.permute.xlu0 %886
    %888 = vrot.lane.b32.xlu0 %v592, 48
    %v889 = vpop.permute.xlu0 %888
    %894 = vrot.lane.b32.xlu0 %v595, 64
    %v895 = vpop.permute.xlu0 %894
    %896 = vrot.lane.b32.xlu0 %v598, 64
    %v897 = vpop.permute.xlu0 %896
    %902 = vrot.lane.b32.xlu0 %v601, 80
    %v903 = vpop.permute.xlu0 %902
    %904 = vrot.lane.b32.xlu0 %v604, 80
    %v905 = vpop.permute.xlu0 %904
    %910 = vrot.lane.b32.xlu0 %v607, 96
    %v911 = vpop.permute.xlu0 %910
    %912 = vrot.lane.b32.xlu0 %v610, 96
    %v913 = vpop.permute.xlu0 %912
    %918 = vrot.lane.b32.xlu0 %v613, 112
    %v919 = vpop.permute.xlu0 %918
    %920 = vrot.lane.b32.xlu0 %v616, 112
    %v921 = vpop.permute.xlu0 %920
    %v924 = vsel %vm168, %v523, %v815
    %v925 = vsel %vm168, %v526, %v817
    %v926 = vsel %vm780, %v924, %v823
    %v927 = vsel %vm780, %v925, %v825
    %v928 = vsel %vm783, %v926, %v831
    %v929 = vsel %vm783, %v927, %v833
    %v930 = vsel %vm786, %v928, %v839
    %v931 = vsel %vm786, %v929, %v841
    %v932 = vsel %vm789, %v930, %v847
    %v933 = vsel %vm789, %v931, %v849
    %v934 = vsel %vm792, %v932, %v855
    %v935 = vsel %vm792, %v933, %v857
    %v936 = vsel %vm795, %v934, %v863
    %v937 = vsel %vm795, %v935, %v865
    %v938 = vsel %vm168, %v571, %v871
    %v939 = vsel %vm168, %v574, %v873
    %v940 = vsel %vm780, %v938, %v879
    %v941 = vsel %vm780, %v939, %v881
    %v942 = vsel %vm783, %v940, %v887
    %v943 = vsel %vm783, %v941, %v889
    %v944 = vsel %vm786, %v942, %v895
    %v945 = vsel %vm786, %v943, %v897
    %v946 = vsel %vm789, %v944, %v903
    %v947 = vsel %vm789, %v945, %v905
    %v948 = vsel %vm792, %v946, %v911
    %v949 = vsel %vm792, %v947, %v913
    %v950 = vsel %vm795, %v948, %v919
    %v951 = vsel %vm795, %v949, %v921
    %954 = vrot.lane.b32.xlu0 %v625, 16
    %v955 = vpop.permute.xlu0 %954
    %956 = vrot.lane.b32.xlu0 %v628, 16
    %v957 = vpop.permute.xlu0 %956
    %962 = vrot.lane.b32.xlu0 %v631, 32
    %v963 = vpop.permute.xlu0 %962
    %964 = vrot.lane.b32.xlu0 %v634, 32
    %v965 = vpop.permute.xlu0 %964
    %970 = vrot.lane.b32.xlu0 %v637, 48
    %v971 = vpop.permute.xlu0 %970
    %972 = vrot.lane.b32.xlu0 %v640, 48
    %v973 = vpop.permute.xlu0 %972
    %978 = vrot.lane.b32.xlu0 %v643, 64
    %v979 = vpop.permute.xlu0 %978
    %980 = vrot.lane.b32.xlu0 %v646, 64
    %v981 = vpop.permute.xlu0 %980
    %986 = vrot.lane.b32.xlu0 %v649, 80
    %v987 = vpop.permute.xlu0 %986
    %988 = vrot.lane.b32.xlu0 %v652, 80
    %v989 = vpop.permute.xlu0 %988
    %994 = vrot.lane.b32.xlu0 %v655, 96
    %v995 = vpop.permute.xlu0 %994
    %996 = vrot.lane.b32.xlu0 %v658, 96
    %v997 = vpop.permute.xlu0 %996
    %1002 = vrot.lane.b32.xlu0 %v661, 112
    %v1003 = vpop.permute.xlu0 %1002
    %1004 = vrot.lane.b32.xlu0 %v664, 112
    %v1005 = vpop.permute.xlu0 %1004
    %v1008 = vsel %vm168, %v619, %v955
    %v1009 = vsel %vm168, %v622, %v957
    %v1010 = vsel %vm780, %v1008, %v963
    %v1011 = vsel %vm780, %v1009, %v965
    %v1012 = vsel %vm783, %v1010, %v971
    %v1013 = vsel %vm783, %v1011, %v973
    %v1014 = vsel %vm786, %v1012, %v979
    %v1015 = vsel %vm786, %v1013, %v981
    %v1016 = vsel %vm789, %v1014, %v987
    %v1017 = vsel %vm789, %v1015, %v989
    %v1018 = vsel %vm792, %v1016, %v995
    %v1019 = vsel %vm792, %v1017, %v997
    %v1020 = vsel %vm795, %v1018, %v1003
    %v1021 = vsel %vm795, %v1019, %v1005
    %v1023 = vsel %vm168, %v84, 0
    %v1026 = vsel %vm168, %v85, 0
    %1028 = vmatpush.msra.mxu0 0.0
    %1029 = vmatpush.msra.mxu0 0.0
    %1030 = vmatpush.msra.mxu0 0.0
    %1031 = vmatpush.msra.mxu0 0.0
    %1032 = vmatpush.msra.mxu0 0.0
    %1033 = vmatpush.msra.mxu0 0.0
    %1034 = vmatpush.msra.mxu0 0.0
    %1035 = vmatpush.msra.mxu0 0.0
    %1036 = vmatpush.msra.mxu0 0.0
    %1037 = vmatpush.msra.mxu0 0.0
    %1038 = vmatpush.msra.mxu0 0.0
    %1039 = vmatpush.msra.mxu0 0.0
    %1040 = vmatpush.msra.mxu0 0.0
    %1041 = vmatpush.msra.mxu0 0.0
    %1042 = vmatpush.msra.mxu0 %v797
    %1043 = vmatpush.msra.mxu0 %v796
    %1044 = vmatmul.f32.gmra.mxu0 %v1023
    %v1045 = vpop.f32.mrf.mxu0
    %v1046 = vadd.f32 0.0, %v1045
    %1047 = vmatmul.f32.gmra.mxu0 %v1026
    %v1048 = vpop.f32.mrf.mxu0
    %v1049 = vadd.f32 0.0, %v1048
    %1050 = vdwg.mxu0
    %1051 = vmatpush.msra.mxu0 0.0
    %1052 = vmatpush.msra.mxu0 0.0
    %1053 = vmatpush.msra.mxu0 0.0
    %1054 = vmatpush.msra.mxu0 0.0
    %1055 = vmatpush.msra.mxu0 0.0
    %1056 = vmatpush.msra.mxu0 0.0
    %1057 = vmatpush.msra.mxu0 0.0
    %1058 = vmatpush.msra.mxu0 0.0
    %1059 = vmatpush.msra.mxu0 0.0
    %1060 = vmatpush.msra.mxu0 0.0
    %1061 = vmatpush.msra.mxu0 0.0
    %1062 = vmatpush.msra.mxu0 0.0
    %1063 = vmatpush.msra.mxu0 0.0
    %1064 = vmatpush.msra.mxu0 0.0
    %1065 = vmatpush.msra.mxu0 %v811
    %1066 = vmatpush.msra.mxu0 %v810
    %1067 = vmatmul.f32.gmra.mxu0 %v1023
    %v1068 = vpop.f32.mrf.mxu0
    %v1069 = vadd.f32 0.0, %v1068
    %1070 = vmatmul.f32.gmra.mxu0 %v1026
    %v1071 = vpop.f32.mrf.mxu0
    %v1072 = vadd.f32 0.0, %v1071
    %1073 = vdwg.mxu0
    %1074 = vmatpush.msra.mxu0 0.0
    %1075 = vmatpush.msra.mxu0 0.0
    %1076 = vmatpush.msra.mxu0 0.0
    %1077 = vmatpush.msra.mxu0 0.0
    %1078 = vmatpush.msra.mxu0 0.0
    %1079 = vmatpush.msra.mxu0 0.0
    %1080 = vmatpush.msra.mxu0 0.0
    %1081 = vmatpush.msra.mxu0 0.0
    %1082 = vmatpush.msra.mxu0 0.0
    %1083 = vmatpush.msra.mxu0 0.0
    %1084 = vmatpush.msra.mxu0 0.0
    %1085 = vmatpush.msra.mxu0 0.0
    %1086 = vmatpush.msra.mxu0 0.0
    %1087 = vmatpush.msra.mxu0 0.0
    %1088 = vmatpush.msra.mxu0 %v937
    %1089 = vmatpush.msra.mxu0 %v936
    %1090 = vmatmul.f32.gmra.mxu0 %v1023
    %v1091 = vpop.f32.mrf.mxu0
    %v1092 = vadd.f32 0.0, %v1091
    %1093 = vmatmul.f32.gmra.mxu0 %v1026
    %v1094 = vpop.f32.mrf.mxu0
    %v1095 = vadd.f32 0.0, %v1094
    %1096 = vdwg.mxu0
    %1097 = vmatpush.msra.mxu0 0.0
    %1098 = vmatpush.msra.mxu0 0.0
    %1099 = vmatpush.msra.mxu0 0.0
    %1100 = vmatpush.msra.mxu0 0.0
    %1101 = vmatpush.msra.mxu0 0.0
    %1102 = vmatpush.msra.mxu0 0.0
    %1103 = vmatpush.msra.mxu0 0.0
    %1104 = vmatpush.msra.mxu0 0.0
    %1105 = vmatpush.msra.mxu0 0.0
    %1106 = vmatpush.msra.mxu0 0.0
    %1107 = vmatpush.msra.mxu0 0.0
    %1108 = vmatpush.msra.mxu0 0.0
    %1109 = vmatpush.msra.mxu0 0.0
    %1110 = vmatpush.msra.mxu0 0.0
    %1111 = vmatpush.msra.mxu0 %v951
    %1112 = vmatpush.msra.mxu0 %v950
    %1113 = vmatmul.f32.gmra.mxu0 %v1023
    %v1114 = vpop.f32.mrf.mxu0
    %v1115 = vadd.f32 0.0, %v1114
    %1116 = vmatmul.f32.gmra.mxu0 %v1026
    %v1117 = vpop.f32.mrf.mxu0
    %v1118 = vadd.f32 0.0, %v1117
    %1119 = vdwg.mxu0
    %1120 = vmatpush.msra.mxu0 0.0
    %1121 = vmatpush.msra.mxu0 0.0
    %1122 = vmatpush.msra.mxu0 0.0
    %1123 = vmatpush.msra.mxu0 0.0
    %1124 = vmatpush.msra.mxu0 0.0
    %1125 = vmatpush.msra.mxu0 0.0
    %1126 = vmatpush.msra.mxu0 0.0
    %1127 = vmatpush.msra.mxu0 0.0
    %1128 = vmatpush.msra.mxu0 0.0
    %1129 = vmatpush.msra.mxu0 0.0
    %1130 = vmatpush.msra.mxu0 0.0
    %1131 = vmatpush.msra.mxu0 0.0
    %1132 = vmatpush.msra.mxu0 0.0
    %1133 = vmatpush.msra.mxu0 0.0
    %1134 = vmatpush.msra.mxu0 %v1021
    %1135 = vmatpush.msra.mxu0 %v1020
    %1136 = vmatmul.f32.gmra.mxu0 %v1023
    %v1137 = vpop.f32.mrf.mxu0
    %v1138 = vadd.f32 0.0, %v1137
    %1139 = vmatmul.f32.gmra.mxu0 %v1026
    %v1140 = vpop.f32.mrf.mxu0
    %v1141 = vadd.f32 0.0, %v1140
    %1142 = vdwg.mxu0
    %v1143 = vmul.f32 %v1046, %v1046
    %v1144 = vmul.f32 %v1049, %v1049
    %v1145 = vmul.f32 %v1069, %v1069
    %v1146 = vmul.f32 %v1072, %v1072
    %v1147 = vmul.f32 %v1046, %v1069
    %v1148 = vmul.f32 %v1049, %v1072
    %v1149 = vsub.f32 %v1092, %v1143
    %v1150 = vsub.f32 %v1095, %v1144
    %v1151 = vsub.f32 %v1115, %v1145
    %v1152 = vsub.f32 %v1118, %v1146
    %v1153 = vsub.f32 %v1138, %v1147
    %v1154 = vsub.f32 %v1141, %v1148
    %v1155 = vmul.f32 %v1147, 2.0
    %v1156 = vmul.f32 %v1148, 2.0
    %v1157 = vadd.f32 %v1155, 0.0001
    %v1158 = vadd.f32 %v1156, 0.0001
    %v1159 = vmul.f32 %v1153, 2.0
    %v1160 = vmul.f32 %v1154, 2.0
    %v1161 = vadd.f32 %v1159, 0.0009
    %v1162 = vadd.f32 %v1160, 0.0009
    %v1163 = vmul.f32 %v1157, %v1161
    %v1164 = vmul.f32 %v1158, %v1162
    %v1165 = vadd.f32 %v1143, %v1145
    %v1166 = vadd.f32 %v1144, %v1146
    %v1167 = vadd.f32 %v1165, 0.0001
    %v1168 = vadd.f32 %v1166, 0.0001
    %v1169 = vadd.f32 %v1149, %v1151
    %v1170 = vadd.f32 %v1150, %v1152
    %v1171 = vadd.f32 %v1169, 0.0009
    %v1172 = vadd.f32 %v1170, 0.0009
    %v1173 = vmul.f32 %v1167, %v1171
    %v1174 = vmul.f32 %v1168, %v1172
    %v1175 = vrcp.pop %v1173
    %v1176 = vmul.f32 %v1173, %v1175
    %v1177 = vsub.f32 1.0, %v1176
    %v1178 = vmul.f32 %v1175, %v1177
    %v1179 = vadd.f32 %v1175, %v1178
    %vm1180 = vweird.f32 %v1173
    %vm1181 = vweird.f32 %v1175
    %vm1182 = vmor %vm1180, %vm1181
    %v1183 = vsel %vm1182, %v1175, %v1179
    %v1184 = vand.u32 2147483647, %v1173
    %vm1185 = vcmp.eq.f32.partialorder %v1184, 8.507059e+37
    %v1186 = vand.u32 %v1173, 2147483648
    %v1187 = vor.u32 1.1754944e-38, %v1186
    %v1188 = vsel %vm1185, %v1187, %v1183
    %v1189 = vmul.f32 %v1163, %v1188
    %v1190 = vrcp.pop %v1174
    %v1191 = vmul.f32 %v1174, %v1190
    %v1192 = vsub.f32 1.0, %v1191
    %v1193 = vmul.f32 %v1190, %v1192
    %v1194 = vadd.f32 %v1190, %v1193
    %vm1195 = vweird.f32 %v1174
    %vm1196 = vweird.f32 %v1190
    %vm1197 = vmor %vm1195, %vm1196
    %v1198 = vsel %vm1197, %v1190, %v1194
    %v1199 = vand.u32 2147483647, %v1174
    %vm1200 = vcmp.eq.f32.partialorder %v1199, 8.507059e+37
    %v1201 = vand.u32 %v1174, 2147483648
    %v1202 = vor.u32 1.1754944e-38, %v1201
    %v1203 = vsel %vm1200, %v1202, %v1198
    %v1204 = vmul.f32 %v1164, %v1203
    %v1205 = vsub.f32 %v88, %v104
    %v1206 = vsub.f32 %v89, %v105
    %v1207 = vsub.f32 %v90, %v106
    %v1208 = vsub.f32 %v91, %v107
    %v1209 = vsub.f32 %v92, %v108
    %v1210 = vsub.f32 %v93, %v109
    %v1211 = vsub.f32 %v94, %v110
    %v1212 = vsub.f32 %v95, %v111
    %v1213 = vsub.f32 %v96, %v112
    %v1214 = vsub.f32 %v97, %v113
    %v1215 = vsub.f32 %v98, %v114
    %v1216 = vsub.f32 %v99, %v115
    %v1217 = vsub.f32 %v100, %v116
    %v1218 = vsub.f32 %v101, %v117
    %v1219 = vsub.f32 %v102, %v118
    %v1220 = vsub.f32 %v103, %v119
    %v1221 = vand.u32 2147483647, %v1205
    %v1222 = vand.u32 2147483647, %v1206
    %v1223 = vand.u32 2147483647, %v1207
    %v1224 = vand.u32 2147483647, %v1208
    %v1225 = vand.u32 2147483647, %v1209
    %v1226 = vand.u32 2147483647, %v1210
    %v1227 = vand.u32 2147483647, %v1211
    %v1228 = vand.u32 2147483647, %v1212
    %v1229 = vand.u32 2147483647, %v1213
    %v1230 = vand.u32 2147483647, %v1214
    %v1231 = vand.u32 2147483647, %v1215
    %v1232 = vand.u32 2147483647, %v1216
    %v1233 = vand.u32 2147483647, %v1217
    %v1234 = vand.u32 2147483647, %v1218
    %v1235 = vand.u32 2147483647, %v1219
    %v1236 = vand.u32 2147483647, %v1220
    %vm1237 = vcmp.lt.f32.partialorder %v1221, 0.05
    %vm1238 = vcmp.lt.f32.partialorder %v1222, 0.05
    %vm1239 = vcmp.lt.f32.partialorder %v1223, 0.05
    %vm1240 = vcmp.lt.f32.partialorder %v1224, 0.05
    %vm1241 = vcmp.lt.f32.partialorder %v1225, 0.05
    %vm1242 = vcmp.lt.f32.partialorder %v1226, 0.05
    %vm1243 = vcmp.lt.f32.partialorder %v1227, 0.05
    %vm1244 = vcmp.lt.f32.partialorder %v1228, 0.05
    %vm1245 = vcmp.lt.f32.partialorder %v1229, 0.05
    %vm1246 = vcmp.lt.f32.partialorder %v1230, 0.05
    %vm1247 = vcmp.lt.f32.partialorder %v1231, 0.05
    %vm1248 = vcmp.lt.f32.partialorder %v1232, 0.05
    %vm1249 = vcmp.lt.f32.partialorder %v1233, 0.05
    %vm1250 = vcmp.lt.f32.partialorder %v1234, 0.05
    %vm1251 = vcmp.lt.f32.partialorder %v1235, 0.05
    %vm1252 = vcmp.lt.f32.partialorder %v1236, 0.05
    %v1253 = vsel %vm1237, 1, 0
    %v1254 = vsel %vm1238, 1, 0
    %v1255 = vsel %vm1239, 1, 0
    %v1256 = vsel %vm1240, 1, 0
    %v1257 = vsel %vm1241, 1, 0
    %v1258 = vsel %vm1242, 1, 0
    %v1259 = vsel %vm1243, 1, 0
    %v1260 = vsel %vm1244, 1, 0
    %v1261 = vsel %vm1245, 1, 0
    %v1262 = vsel %vm1246, 1, 0
    %v1263 = vsel %vm1247, 1, 0
    %v1264 = vsel %vm1248, 1, 0
    %v1265 = vsel %vm1249, 1, 0
    %v1266 = vsel %vm1250, 1, 0
    %v1267 = vsel %vm1251, 1, 0
    %v1268 = vsel %vm1252, 1, 0
    %v1269 = vcvt.s32.f32 %v1253
    %v1270 = vcvt.s32.f32 %v1254
    %v1271 = vcvt.s32.f32 %v1255
    %v1272 = vcvt.s32.f32 %v1256
    %v1273 = vcvt.s32.f32 %v1257
    %v1274 = vcvt.s32.f32 %v1258
    %v1275 = vcvt.s32.f32 %v1259
    %v1276 = vcvt.s32.f32 %v1260
    %v1277 = vcvt.s32.f32 %v1261
    %v1278 = vcvt.s32.f32 %v1262
    %v1279 = vcvt.s32.f32 %v1263
    %v1280 = vcvt.s32.f32 %v1264
    %v1281 = vcvt.s32.f32 %v1265
    %v1282 = vcvt.s32.f32 %v1266
    %v1283 = vcvt.s32.f32 %v1267
    %v1284 = vcvt.s32.f32 %v1268
    %v1285 = vadd.f32 %v1189, %v1204
    %1286 = vadd.xlane.f32.xlu0 %v1285
    %v1287 = vpop.xlane.xlu0 %1286
    %v1288 = vrot.slane %v1287, 4
    %v1289 = vadd.f32 %v1287, %v1288
    %v1290 = vrot.slane %v1289, 2
    %v1291 = vadd.f32 %v1289, %v1290
    %v1292 = vrot.slane %v1291, 1
    %v1293 = vadd.f32 %v1291, %v1292
    %s1294 = vtos %v1293
    %v1295 = vstv %s1294
    %1296 = vst [vmem:[#allocation10] sm:$0xff] %v1295
    %v1297 = vsel %vm168, %v1269, 0.0
    %v1298 = vsel %vm168, %v1270, 0.0
    %v1299 = vadd.f32 %v1297, %v1298
    %v1300 = vsel %vm168, %v1271, 0.0
    %v1301 = vadd.f32 %v1299, %v1300
    %v1302 = vsel %vm168, %v1272, 0.0
    %v1303 = vadd.f32 %v1301, %v1302
    %v1304 = vsel %vm168, %v1273, 0.0
    %v1305 = vadd.f32 %v1303, %v1304
    %v1306 = vsel %vm168, %v1274, 0.0
    %v1307 = vadd.f32 %v1305, %v1306
    %v1308 = vsel %vm168, %v1275, 0.0
    %v1309 = vadd.f32 %v1307, %v1308
    %v1310 = vsel %vm168, %v1276, 0.0
    %v1311 = vadd.f32 %v1309, %v1310
    %v1312 = vsel %vm168, %v1277, 0.0
    %v1313 = vadd.f32 %v1311, %v1312
    %v1314 = vsel %vm168, %v1278, 0.0
    %v1315 = vadd.f32 %v1313, %v1314
    %v1316 = vsel %vm168, %v1279, 0.0
    %v1317 = vadd.f32 %v1315, %v1316
    %v1318 = vsel %vm168, %v1280, 0.0
    %v1319 = vadd.f32 %v1317, %v1318
    %v1320 = vsel %vm168, %v1281, 0.0
    %v1321 = vadd.f32 %v1319, %v1320
    %v1322 = vsel %vm168, %v1282, 0.0
    %v1323 = vadd.f32 %v1321, %v1322
    %v1324 = vsel %vm168, %v1283, 0.0
    %v1325 = vadd.f32 %v1323, %v1324
    %v1326 = vsel %vm168, %v1284, 0.0
    %v1327 = vadd.f32 %v1325, %v1326
    %1328 = vadd.xlane.f32.xlu0 %v1327
    %v1329 = vpop.xlane.xlu0 %1328
    %v1330 = vrot.slane %v1329, 4
    %v1331 = vadd.f32 %v1329, %v1330
    %v1332 = vrot.slane %v1331, 2
    %v1333 = vadd.f32 %v1331, %v1332
    %v1334 = vrot.slane %v1333, 1
    %v1335 = vadd.f32 %v1333, %v1334
    %s1336 = vtos %v1335
    %v1337 = vstv %s1336
    %1338 = vst [vmem:[#allocation11] sm:$0xff] %v1337
    // Predicated region
    $region34: #{tpu_custom_call.1} parent=1 // pred_check
      _
    $region35: #{tpu_custom_call.1} parent=1 // pred_check_branch
      %1340 = sbr.rel (0) target = $region37
    $region36: #{tpu_custom_call.1} parent=1 // pred_region
      %1342 = vsyncadd [#allocation4], 0
      %s1344 = sshll.u32 [#allocation10], 4
      %s1345 = int_to_ptr.vmem [resolvable:$true] %s1344
      %s1346 = sshll.u32 %s4, 4
      %s1347 = int_to_ptr.hbm [resolvable:$true] %s1346
      %1349 = dma.vmem_to_hbm [thread:$0]  %s1345, 128, %s1347, [#allocation4]
    $region37: #{tpu_custom_call.1} parent=1 // pred_fallthru
      _
    // Predicated region
    $region38: #{tpu_custom_call.1} parent=1 // pred_check
      _
    $region39: #{tpu_custom_call.1} parent=1 // pred_check_branch
      %1351 = sbr.rel (0) target = $region41
    $region40: #{tpu_custom_call.1} parent=1 // pred_region
      %1353 = vsyncadd [#allocation12], 0
      %s1355 = sshll.u32 [#allocation11], 4
      %s1356 = int_to_ptr.vmem [resolvable:$true] %s1355
      %s1357 = sshll.u32 %s5, 4
      %s1358 = int_to_ptr.hbm [resolvable:$true] %s1357
      %1360 = dma.vmem_to_hbm [thread:$0]  %s1356, 128, %s1358, [#allocation12]
    $region41: #{tpu_custom_call.1} parent=1 // pred_fallthru
      _
    // Predicated region
    $region42: #{tpu_custom_call.1} parent=1 // pred_check
      _
    $region43: #{tpu_custom_call.1} parent=1 // pred_check_branch
      %1362 = sbr.rel (0) target = $region45
    $region44: #{tpu_custom_call.1} parent=1 // pred_region
      %1364 = dma.done [#allocation4], 128
    $region45: #{tpu_custom_call.1} parent=1 // pred_fallthru
      _
    // Predicated region
    $region46: #{tpu_custom_call.1} parent=1 // pred_check
      _
    $region47: #{tpu_custom_call.1} parent=1 // pred_check_branch
      %1366 = sbr.rel (0) target = $region49
    $region48: #{tpu_custom_call.1} parent=1 // pred_region
      %1368 = dma.done [#allocation12], 128
    $region49: #{tpu_custom_call.1} parent=1 // pred_fallthru
      _
    %1369 = vsyncpa [#allocation3], 1
    %1370 = vsyncpa [#allocation6], 1
    %1371 = vsyncpa [#allocation9], 1
    %1372 = vsyncpa [#allocation4], 1
    %1373 = vsyncpa [#allocation12], 1

</llo_original>
